<compile_context>
chip_gen: v6e
topology: v6e:2x2x1
jax: 0.10.0
libtpu: 0.0.40
codegen_flags: <defaults>
</compile_context>

<pallas_src>
import functools

import jax
import jax.numpy as jnp
from jax import lax
from jax.experimental import pallas as pl
from jax.experimental.pallas import tpu as pltpu


def _balanced_ce_kernel(logits_ref, logspc_ref, labels_ref, loss_ref,
                        m_sc, l_sc, p_sc, *, num_classes, c_chunk):
    """Grid step (i, j): row tile i, class chunk j. Online LSE across j."""
    j = pl.program_id(1)

    @pl.when(j == 0)
    def _():
        m_sc[...] = jnp.full(m_sc.shape, -jnp.inf, dtype=jnp.float32)
        l_sc[...] = jnp.zeros(l_sc.shape, dtype=jnp.float32)
        p_sc[...] = jnp.zeros(p_sc.shape, dtype=jnp.float32)

    # adjusted logits for this class chunk, in f32: x = input + log(freq)
    x = logits_ref[...].astype(jnp.float32) + logspc_ref[...]          # (TN, CC)

    # global class index of every column of this chunk
    col = lax.broadcasted_iota(jnp.int32, x.shape, 1) + j * c_chunk    # (TN, CC)

    if num_classes % c_chunk != 0:
        # partial last class chunk: neutralize padding columns (garbage reads)
        x = jnp.where(col < num_classes, x, -jnp.inf)

    # online (flash-style) log-sum-exp across class chunks
    m_prev = m_sc[...]                                                 # (TN, 1)
    m_new = jnp.maximum(m_prev, jnp.max(x, axis=-1, keepdims=True))
    alpha = jnp.exp(m_prev - m_new)                                    # 0 on first chunk
    l_sc[...] = alpha * l_sc[...] + jnp.sum(jnp.exp(x - m_new), axis=-1, keepdims=True)
    m_sc[...] = m_new

    # gather x[i, labels[i]]: exactly one chunk contributes per row
    lab = labels_ref[...]                                              # (TN, 1) int32
    p_sc[...] = p_sc[...] + jnp.sum(jnp.where(col == lab, x, 0.0),
                                    axis=-1, keepdims=True)

    @pl.when(j == pl.num_programs(1) - 1)
    def _():
        # loss = logsumexp(x) - x[label]
        loss_ref[...] = m_sc[...] + jnp.log(l_sc[...]) - p_sc[...]


def _choose_tiling(N, C, itemsize):
    """Pick (tile_n, c_chunk, vmem_limit_bytes), dtype/intermediate/generation aware."""
    try:
        vmem_bytes = pltpu.get_tpu_info().vmem_capacity_bytes
    except Exception:  # pragma: no cover - conservative fallback
        vmem_bytes = 64 << 20

    if vmem_bytes >= (96 << 20):          # v5e / v6e: 128 MiB physical VMEM
        vmem_limit, max_tile_n = 100 << 20, 1024
    else:                                  # v7x: 64 MiB per TensorCore
        vmem_limit, max_tile_n = 48 << 20, 512

    # Dominant per-step VMEM cost per (row, class) element:
    #   2 double-buffered input blocks (logits dtype) + ~4 live f32 intermediates
    bytes_per_elem = 2 * itemsize + 4 * 4
    usable = vmem_limit - (8 << 20)        # headroom: labels/out/log_spc blocks, scratch

    rows_at_full_c = usable // (max(C, 1) * bytes_per_elem)
    if rows_at_full_c >= 256:
        # Single class chunk; grow the row tile as far as the budget allows.
        c_chunk = C
        tile_n = int(min(max_tile_n, (rows_at_full_c // 128) * 128))
    else:
        # Large C: chunk the class axis (online LSE) and keep a healthy row tile.
        tile_n = 256
        c_chunk = usable // (tile_n * bytes_per_elem)
        c_chunk = int(max(512, (c_chunk // 128) * 128))
        c_chunk = min(c_chunk, C)

    # A block dim equal to the full array extent is always layout-legal.
    tile_n = int(min(tile_n, N))
    return tile_n, c_chunk, int(vmem_limit)


def balanced_cross_entropy(logits, labels, freq, reduction="mean",
                           tile_n=None, c_chunk=None):
    """logits: (N, C) float (f32 or bf16), labels: (N,) int, freq: (C,) positive."""
    N, C = logits.shape
    auto_tn, auto_cc, vmem_limit = _choose_tiling(N, C, logits.dtype.itemsize)
    tile_n = auto_tn if tile_n is None else min(int(tile_n), N)
    c_chunk = auto_cc if c_chunk is None else min(int(c_chunk), C)

    n_row_tiles = pl.cdiv(N, tile_n)
    n_class_chunks = pl.cdiv(C, c_chunk)

    # log prior in float32 regardless of logits dtype (only a (1, C) vector)
    log_spc = jnp.log(freq.astype(jnp.float32)).reshape(1, C)
    labels2d = labels.astype(jnp.int32).reshape(N, 1)

    kernel = functools.partial(_balanced_ce_kernel, num_classes=C, c_chunk=c_chunk)

    cost = pl.CostEstimate(
        flops=6 * N * C,
        transcendentals=N * C,
        bytes_accessed=N * C * logits.dtype.itemsize + N * 8 + C * 4,
    )

    per_sample = pl.pallas_call(
        kernel,
        out_shape=jax.ShapeDtypeStruct((N, 1), jnp.float32),
        grid_spec=pltpu.PrefetchScalarGridSpec(
            num_scalar_prefetch=0,
            grid=(n_row_tiles, n_class_chunks),
            in_specs=[
                pl.BlockSpec((tile_n, c_chunk), lambda i, j: (i, j)),   # logits
                pl.BlockSpec((1, c_chunk), lambda i, j: (0, j)),        # log(freq)
                pl.BlockSpec((tile_n, 1), lambda i, j: (i, 0)),         # labels
            ],
            out_specs=pl.BlockSpec((tile_n, 1), lambda i, j: (i, 0)),   # per-sample loss
            scratch_shapes=[pltpu.VMEM((tile_n, 1), jnp.float32)] * 3,  # m, l, picked
        ),
        compiler_params=pltpu.CompilerParams(
            # batch axis independent -> megacore sharding; class axis carries the
            # online-LSE scratch and the resident output block -> arbitrary.
            dimension_semantics=("parallel", "arbitrary"),
            vmem_limit_bytes=vmem_limit,   # v5e scoped default is only 16 MiB
        ),
        cost_estimate=cost,
    )(logits, log_spc, labels2d)

    per_sample = per_sample[:, 0]   # (N,) float32; partial-edge garbage rows were never written

    if reduction == "mean":
        out = jnp.mean(per_sample)
    elif reduction == "sum":
        out = jnp.sum(per_sample)
    else:  # 'none'
        out = per_sample
    # match PyTorch: result carries the input dtype
    return out.astype(logits.dtype)


def _reference(logits, labels, freq, reduction="mean"):
    """Pure-JAX reference of the PyTorch module (f32 math)."""
    x = logits.astype(jnp.float32) + jnp.log(freq.astype(jnp.float32))[None, :]
    logp = jax.nn.log_softmax(x, axis=-1)
    nll = -jnp.take_along_axis(logp, labels[:, None], axis=-1)[:, 0]
    if reduction == "mean":
        return jnp.mean(nll)
    elif reduction == "sum":
        return jnp.sum(nll)
    return nll


if __name__ == "__main__":
    # Test 1: small shapes, default tiling (single class chunk, full-extent row tile)
    N, C = 16, 32
    k1, k2, k3 = jax.random.split(jax.random.PRNGKey(0), 3)
    logits = jax.random.normal(k1, (N, C), dtype=jnp.float32)
    labels = jax.random.randint(k2, (N,), 0, C, dtype=jnp.int32)
    freq = jax.random.uniform(k3, (C,), dtype=jnp.float32, minval=1.0, maxval=100.0)

    loss = jax.block_until_ready(balanced_cross_entropy(logits, labels, freq, "mean"))
    ref = jax.block_until_ready(_reference(logits, labels, freq, "mean"))
    assert jnp.allclose(loss, ref, atol=1e-5, rtol=1e-5), (loss, ref)

    loss_none = jax.block_until_ready(balanced_cross_entropy(logits, labels, freq, "none"))
    ref_none = jax.block_until_ready(_reference(logits, labels, freq, "none"))
    assert jnp.allclose(loss_none, ref_none, atol=1e-5, rtol=1e-5)

    # Test 2: forced small tiles exercise the partial row block, the class-chunked
    # online-LSE path, and the partial-class-chunk mask at small scale.
    N2, C2 = 20, 200
    k4, k5, k6 = jax.random.split(jax.random.PRNGKey(0), 3)
    logits2 = jax.random.normal(k4, (N2, C2), dtype=jnp.float32)
    labels2 = jax.random.randint(k5, (N2,), 0, C2, dtype=jnp.int32)
    freq2 = jax.random.uniform(k6, (C2,), dtype=jnp.float32, minval=1.0, maxval=50.0)

    loss2 = jax.block_until_ready(
        balanced_cross_entropy(logits2, labels2, freq2, "sum", tile_n=8, c_chunk=128))
    ref2 = jax.block_until_ready(_reference(logits2, labels2, freq2, "sum"))
    assert jnp.allclose(loss2, ref2, atol=1e-4, rtol=1e-4), (loss2, ref2)

    # TODO(synk): backward pass (softmax - one_hot) is left to autodiff of the
    # wrapper math at the call site; only the forward is implemented as a kernel.
    print("KERNEL_OK")
</pallas_src>

<mosaic_0001>
module attributes {stable_mosaic.version = 11 : i64} {
  func.func @_balanced_ce_kernel(%arg0: i32, %arg1: i32, %arg2: memref<16x32xf32, #tpu.memory_space<vmem>>, %arg3: memref<1x32xf32, #tpu.memory_space<vmem>>, %arg4: memref<16x1xi32, #tpu.memory_space<vmem>>, %arg5: memref<16x1xf32, #tpu.memory_space<vmem>>, %arg6: memref<16x1xf32, #tpu.memory_space<vmem>>, %arg7: memref<16x1xf32, #tpu.memory_space<vmem>>, %arg8: memref<16x1xf32, #tpu.memory_space<vmem>>) attributes {dimension_semantics = [#tpu.dimension_semantics<parallel>, #tpu.dimension_semantics<arbitrary>], iteration_bounds = array<i64: 1, 1>, scalar_prefetch = 0 : i64, scratch_operands = 3 : i64, tpu.core_type = #tpu.core_type<tc>, window_params = [{transform_indices = @transform_0, window_bounds = array<i64: 16, 32>}, {transform_indices = @transform_1, window_bounds = array<i64: 1, 32>}, {transform_indices = @transform_2, window_bounds = array<i64: 16, 1>}, {transform_indices = @transform_3, window_bounds = array<i64: 16, 1>}]} {
    %c0_i32 = arith.constant 0 : i32
    %0 = arith.cmpi eq, %arg1, %c0_i32 : i32
    %1 = arith.extui %0 : i1 to i32
    %c0_i32_0 = arith.constant 0 : i32
    %2 = arith.cmpi ne, %1, %c0_i32_0 : i32
    scf.if %2 {
      %cst_23 = arith.constant 0xFF800000 : f32
      %40 = vector.broadcast %cst_23 : f32 to vector<16x1xf32>
      %c0_24 = arith.constant 0 : index
      %c0_25 = arith.constant 0 : index
      %41 = vector.load %arg6[%c0_24, %c0_25] : memref<16x1xf32, #tpu.memory_space<vmem>>, vector<16x1xf32>
      tpu.vector_store %arg6[%c0_24, %c0_25], %40 {strides = array<i32>} : memref<16x1xf32, #tpu.memory_space<vmem>>, vector<16x1xf32>,
      %cst_26 = arith.constant 0.000000e+00 : f32
      %42 = vector.broadcast %cst_26 : f32 to vector<16x1xf32>
      %c0_27 = arith.constant 0 : index
      %c0_28 = arith.constant 0 : index
      %43 = vector.load %arg7[%c0_27, %c0_28] : memref<16x1xf32, #tpu.memory_space<vmem>>, vector<16x1xf32>
      tpu.vector_store %arg7[%c0_27, %c0_28], %42 {strides = array<i32>} : memref<16x1xf32, #tpu.memory_space<vmem>>, vector<16x1xf32>,
      %cst_29 = arith.constant 0.000000e+00 : f32
      %44 = vector.broadcast %cst_29 : f32 to vector<16x1xf32>
      %c0_30 = arith.constant 0 : index
      %c0_31 = arith.constant 0 : index
      %45 = vector.load %arg8[%c0_30, %c0_31] : memref<16x1xf32, #tpu.memory_space<vmem>>, vector<16x1xf32>
      tpu.vector_store %arg8[%c0_30, %c0_31], %44 {strides = array<i32>} : memref<16x1xf32, #tpu.memory_space<vmem>>, vector<16x1xf32>,
    } else {
    }
    %c0 = arith.constant 0 : index
    %c0_1 = arith.constant 0 : index
    %3 = vector.load %arg2[%c0, %c0_1] : memref<16x32xf32, #tpu.memory_space<vmem>>, vector<16x32xf32>
    %c0_2 = arith.constant 0 : index
    %c0_3 = arith.constant 0 : index
    %4 = vector.load %arg3[%c0_2, %c0_3] : memref<1x32xf32, #tpu.memory_space<vmem>>, vector<1x32xf32>
    %5 = vector.broadcast %4 : vector<1x32xf32> to vector<16x32xf32>
    %6 = arith.addf %3, %5 : vector<16x32xf32>
    %7 = tpu.iota {dimensions = array<i32: 1>} : vector<16x32xi32>
    %c32_i32 = arith.constant 32 : i32
    %8 = arith.muli %arg1, %c32_i32 : i32
    %9 = vector.broadcast %8 : i32 to vector<16x32xi32>
    %10 = arith.addi %7, %9 : vector<16x32xi32>
    %c0_4 = arith.constant 0 : index
    %c0_5 = arith.constant 0 : index
    %11 = vector.load %arg6[%c0_4, %c0_5] : memref<16x1xf32, #tpu.memory_space<vmem>>, vector<16x1xf32>
    %cst = arith.constant dense<0xFF800000> : vector<16xf32>
    %12 = vector.multi_reduction <maximumf>, %6, %cst [1] : vector<16x32xf32> to vector<16xf32>
    %13 = vector.shape_cast %12 : vector<16xf32> to vector<16x1xf32>
    %14 = arith.maximumf %11, %13 : vector<16x1xf32>
    %15 = arith.subf %11, %14 : vector<16x1xf32>
    %16 = math.exp %15 : vector<16x1xf32>
    %c0_6 = arith.constant 0 : index
    %c0_7 = arith.constant 0 : index
    %17 = vector.load %arg7[%c0_6, %c0_7] : memref<16x1xf32, #tpu.memory_space<vmem>>, vector<16x1xf32>
    %18 = arith.mulf %16, %17 : vector<16x1xf32>
    %19 = vector.broadcast %14 : vector<16x1xf32> to vector<16x32xf32>
    %20 = arith.subf %6, %19 : vector<16x32xf32>
    %21 = math.exp %20 : vector<16x32xf32>
    %cst_8 = arith.constant dense<0.000000e+00> : vector<16xf32>
    %22 = vector.multi_reduction <add>, %21, %cst_8 [1] : vector<16x32xf32> to vector<16xf32>
    %23 = vector.shape_cast %22 : vector<16xf32> to vector<16x1xf32>
    %24 = arith.addf %18, %23 : vector<16x1xf32>
    %c0_9 = arith.constant 0 : index
    %c0_10 = arith.constant 0 : index
    %25 = vector.load %arg7[%c0_9, %c0_10] : memref<16x1xf32, #tpu.memory_space<vmem>>, vector<16x1xf32>
    tpu.vector_store %arg7[%c0_9, %c0_10], %24 {strides = array<i32>} : memref<16x1xf32, #tpu.memory_space<vmem>>, vector<16x1xf32>,
    %c0_11 = arith.constant 0 : index
    %c0_12 = arith.constant 0 : index
    %26 = vector.load %arg6[%c0_11, %c0_12] : memref<16x1xf32, #tpu.memory_space<vmem>>, vector<16x1xf32>
    tpu.vector_store %arg6[%c0_11, %c0_12], %14 {strides = array<i32>} : memref<16x1xf32, #tpu.memory_space<vmem>>, vector<16x1xf32>,
    %c0_13 = arith.constant 0 : index
    %c0_14 = arith.constant 0 : index
    %27 = vector.load %arg4[%c0_13, %c0_14] : memref<16x1xi32, #tpu.memory_space<vmem>>, vector<16x1xi32>
    %c0_15 = arith.constant 0 : index
    %c0_16 = arith.constant 0 : index
    %28 = vector.load %arg8[%c0_15, %c0_16] : memref<16x1xf32, #tpu.memory_space<vmem>>, vector<16x1xf32>
    %29 = vector.broadcast %27 : vector<16x1xi32> to vector<16x32xi32>
    %30 = arith.cmpi eq, %10, %29 : vector<16x32xi32>
    %cst_17 = arith.constant 0.000000e+00 : f32
    %31 = vector.broadcast %cst_17 : f32 to vector<16x32xf32>
    %32 = arith.select %30, %6, %31 : vector<16x32xi1>, vector<16x32xf32>
    %cst_18 = arith.constant dense<0.000000e+00> : vector<16xf32>
    %33 = vector.multi_reduction <add>, %32, %cst_18 [1] : vector<16x32xf32> to vector<16xf32>
    %34 = vector.shape_cast %33 : vector<16xf32> to vector<16x1xf32>
    %35 = arith.addf %28, %34 : vector<16x1xf32>
    %c0_19 = arith.constant 0 : index
    %c0_20 = arith.constant 0 : index
    %36 = vector.load %arg8[%c0_19, %c0_20] : memref<16x1xf32, #tpu.memory_space<vmem>>, vector<16x1xf32>
    tpu.vector_store %arg8[%c0_19, %c0_20], %35 {strides = array<i32>} : memref<16x1xf32, #tpu.memory_space<vmem>>, vector<16x1xf32>,
    %c0_i32_21 = arith.constant 0 : i32
    %37 = arith.cmpi eq, %arg1, %c0_i32_21 : i32
    %38 = arith.extui %37 : i1 to i32
    %c0_i32_22 = arith.constant 0 : i32
    %39 = arith.cmpi ne, %38, %c0_i32_22 : i32
    scf.if %39 {
      %c0_23 = arith.constant 0 : index
      %c0_24 = arith.constant 0 : index
      %40 = vector.load %arg6[%c0_23, %c0_24] : memref<16x1xf32, #tpu.memory_space<vmem>>, vector<16x1xf32>
      %c0_25 = arith.constant 0 : index
      %c0_26 = arith.constant 0 : index
      %41 = vector.load %arg7[%c0_25, %c0_26] : memref<16x1xf32, #tpu.memory_space<vmem>>, vector<16x1xf32>
      %42 = math.log %41 : vector<16x1xf32>
      %43 = arith.addf %40, %42 : vector<16x1xf32>
      %c0_27 = arith.constant 0 : index
      %c0_28 = arith.constant 0 : index
      %44 = vector.load %arg8[%c0_27, %c0_28] : memref<16x1xf32, #tpu.memory_space<vmem>>, vector<16x1xf32>
      %45 = arith.subf %43, %44 : vector<16x1xf32>
      %c0_29 = arith.constant 0 : index
      %c0_30 = arith.constant 0 : index
      %46 = vector.load %arg5[%c0_29, %c0_30] : memref<16x1xf32, #tpu.memory_space<vmem>>, vector<16x1xf32>
      tpu.vector_store %arg5[%c0_29, %c0_30], %45 {strides = array<i32>} : memref<16x1xf32, #tpu.memory_space<vmem>>, vector<16x1xf32>,
    } else {
    }
    return
  }
  func.func @transform_0(%arg0: i32, %arg1: i32) -> (i32, i32) {
    %c0_i32 = arith.constant 0 : i32
    return %arg0, %arg1 : i32, i32
  }
  func.func @transform_1(%arg0: i32, %arg1: i32) -> (i32, i32) {
    %c0_i32 = arith.constant 0 : i32
    %c0_i32_0 = arith.constant 0 : i32
    return %c0_i32, %arg1 : i32, i32
  }
  func.func @transform_2(%arg0: i32, %arg1: i32) -> (i32, i32) {
    %c0_i32 = arith.constant 0 : i32
    %c0_i32_0 = arith.constant 0 : i32
    return %arg0, %c0_i32 : i32, i32
  }
  func.func @transform_3(%arg0: i32, %arg1: i32) -> (i32, i32) {
    %c0_i32 = arith.constant 0 : i32
    %c0_i32_0 = arith.constant 0 : i32
    return %arg0, %c0_i32 : i32, i32
  }
}

</mosaic_0001>

<llo_original>
// kernel: tpu_custom_call.1
$region0: #{tpu_custom_call.1}
  #allocation0 [shape = 'u32[]', space=smem, size = 0x4, offset = 0x4, fixed_abs, tag = 'smem constant byte address 0x4 - core index']
  #allocation1 [shape = 'u32[144,128]{1,0:T(1,128)}', space=vmem, size = 0x12000, scoped, tag = 'internal scratch']
  #allocation2 [shape = 'f32[16,1]{1,0:T(8,128)}', space=vmem, size = 0x2000, scoped, tag = 'scratch operand']
  #allocation3 [shape = 'f32[16,1]{1,0:T(8,128)}', space=vmem, size = 0x2000, scoped, tag = 'scratch operand']
  #allocation4 [shape = 'f32[16,1]{1,0:T(8,128)}', space=vmem, size = 0x2000, scoped, tag = 'scratch operand']
  %s0 = inlined_call_operand.vmem [shape: f32[16,32], index: 0, kind: input, shape index: {}]
  %s1 = inlined_call_operand.vmem [shape: f32[1,32], index: 1, kind: input, shape index: {}]
  %s2 = inlined_call_operand.vmem [shape: s32[16,1], index: 2, kind: input, shape index: {}]
  %s3 = inlined_call_operand.vmem [shape: f32[16,1], index: 3, kind: output, shape index: {}]
  %s4 = sld [smem:[#allocation0]]
  $region30: #{tpu_custom_call.1} parent=0
    _
  %s6 = ssub.s32 1, %s4
  %s7 = scalar_select 0, %s6, %s4
  // Predicated region
  $region2: #{tpu_custom_call.1} parent=0 // pred_check
    _
  $region3: #{tpu_custom_call.1} parent=0 // pred_check_branch
    %9 = sbr.rel (0) target = $region5
  $region4: #{tpu_custom_call.1} parent=0 // pred_region
    _
  $region5: #{tpu_custom_call.1} parent=0 // pred_fallthru
    _
  // Predicated region
  $region6: #{tpu_custom_call.1} parent=0 // pred_check
    _
  $region7: #{tpu_custom_call.1} parent=0 // pred_check_branch
    %11 = sbr.rel (0) target = $region9
  $region8: #{tpu_custom_call.1} parent=0 // pred_region
    _
  $region9: #{tpu_custom_call.1} parent=0 // pred_fallthru
    _
  // Predicated region
  $region10: #{tpu_custom_call.1} parent=0 // pred_check
    _
  $region11: #{tpu_custom_call.1} parent=0 // pred_check_branch
    %13 = sbr.rel (0) target = $region13
  $region12: #{tpu_custom_call.1} parent=0 // pred_region
    _
  $region13: #{tpu_custom_call.1} parent=0 // pred_fallthru
    _
  %p14 = scmp.eq.s32.totalorder 0, 0
  // Predicated region
  $region14: #{tpu_custom_call.1} parent=0 // pred_check
    %p15 = pneg %p14
  $region15: #{tpu_custom_call.1} parent=0 // pred_check_branch
    %17 = sbr.rel (%p15) target = $region17
  $region16: #{tpu_custom_call.1} parent=0 // pred_region
    %vm18 = vcmask 7168
    %19 = vst.msk [vmem:[#allocation2] sm:$0xff] %vm18, -inf
    %20 = vst.msk [vmem:[#allocation2 + $0x8] sm:$0xff] %vm18, -inf
    %21 = vst.msk [vmem:[#allocation3] sm:$0xff] %vm18, 0.0
    %22 = vst.msk [vmem:[#allocation3 + $0x8] sm:$0xff] %vm18, 0.0
    %23 = vst.msk [vmem:[#allocation4] sm:$0xff] %vm18, 0.0
    %24 = vst.msk [vmem:[#allocation4 + $0x8] sm:$0xff] %vm18, 0.0
  $region17: #{tpu_custom_call.1} parent=0 // pred_fallthru
    _
  %v25 = vld [vmem:[%s0] sm:$0xff]
  %v26 = vld [vmem:[%s0 + $0x8] sm:$0xff]
  %v27 = vld [vmem:[%s1] sm:$0x1]
  %v29 = vlaneseq
  %v30 = vshrl.u32 %v29, 7
  %v31 = vsub.s32 0, %v30
  %v32 = vrot.slane %v27, %v31
  %v34 = vadd.f32 %v25, %v32
  %v35 = vadd.f32 %v26, %v32
  %v36 = vlaneseq
  %v37 = vand.u32 %v36, 127
  %s38 = smul.u32 0, 32
  %v39 = vstv %s38
  %v40 = vadd.s32 %v37, %v39
  %v41 = vld [vmem:[#allocation2] sm:$0xff]
  %v42 = vld [vmem:[#allocation2 + $0x8] sm:$0xff]
  %vm43 = vcmask 261120
  %v44 = vsel %vm43, %v34, -inf
  %45 = vmax.xlane.f32.xlu0 %v44
  %v46 = vpop.xlane.xlu0 %45
  %v47 = vsel %vm43, %v35, -inf
  %48 = vmax.xlane.f32.xlu0 %v47
  %v49 = vpop.xlane.xlu0 %48
  %v50 = vmax.f32 %v41, %v46
  %v51 = vmax.f32 %v42, %v49
  %v52 = vsub.f32 %v41, %v50
  %v53 = vsub.f32 %v42, %v51
  %v54 = vmul.f32 %v52, 1.442695
  %v55 = vpow.pop %v54
  %v56 = vmul.f32 %v53, 1.442695
  %v57 = vpow.pop %v56
  %v58 = vld [vmem:[#allocation3] sm:$0xff]
  %v59 = vld [vmem:[#allocation3 + $0x8] sm:$0xff]
  %v60 = vmul.f32 %v55, %v58
  %v61 = vmul.f32 %v57, %v59
  %63 = vset.pattern.permute.xlu0 0
  %64 = vperm.xlu0 %63, %v50
  %v65 = vpop.permute.xlu0 %64
  %68 = vset.pattern.permute.xlu0 0
  %69 = vperm.xlu0 %68, %v51
  %v70 = vpop.permute.xlu0 %69
  %v72 = vsub.f32 %v34, %v65
  %v73 = vsub.f32 %v35, %v70
  %v74 = vmul.f32 %v72, 1.442695
  %v75 = vpow.pop %v74
  %v76 = vmul.f32 %v73, 1.442695
  %v77 = vpow.pop %v76
  %v78 = vsel %vm43, %v75, 0.0
  %79 = vadd.xlane.f32.xlu0 %v78
  %v80 = vpop.xlane.xlu0 %79
  %v81 = vsel %vm43, %v77, 0.0
  %82 = vadd.xlane.f32.xlu0 %v81
  %v83 = vpop.xlane.xlu0 %82
  %v84 = vadd.f32 %v60, %v80
  %v85 = vadd.f32 %v61, %v83
  %vm86 = vcmask 7168
  %87 = vst.msk [vmem:[#allocation3] sm:$0xff] %vm86, %v84
  %88 = vst.msk [vmem:[#allocation3 + $0x8] sm:$0xff] %vm86, %v85
  %89 = vst.msk [vmem:[#allocation2] sm:$0xff] %vm86, %v50
  %90 = vst.msk [vmem:[#allocation2 + $0x8] sm:$0xff] %vm86, %v51
  %v91 = vld [vmem:[%s2] sm:$0xff]
  %v92 = vld [vmem:[%s2 + $0x8] sm:$0xff]
  %v93 = vld [vmem:[#allocation4] sm:$0xff]
  %v94 = vld [vmem:[#allocation4 + $0x8] sm:$0xff]
  %95 = vset.pattern.permute.xlu0 0
  %96 = vperm.xlu0 %95, %v91
  %v97 = vpop.permute.xlu0 %96
  %98 = vset.pattern.permute.xlu0 0
  %99 = vperm.xlu0 %98, %v92
  %v100 = vpop.permute.xlu0 %99
  %vm101 = vcmp.eq.s32.totalorder %v40, %v97
  %vm102 = vcmp.eq.s32.totalorder %v40, %v100
  %v103 = vsel %vm101, %v34, 0.0
  %v104 = vsel %vm102, %v35, 0.0
  %v105 = vsel %vm43, %v103, 0.0
  %106 = vadd.xlane.f32.xlu0 %v105
  %v107 = vpop.xlane.xlu0 %106
  %v108 = vsel %vm43, %v104, 0.0
  %109 = vadd.xlane.f32.xlu0 %v108
  %v110 = vpop.xlane.xlu0 %109
  %v111 = vadd.f32 %v93, %v107
  %v112 = vadd.f32 %v94, %v110
  %113 = vst.msk [vmem:[#allocation4] sm:$0xff] %vm86, %v111
  %114 = vst.msk [vmem:[#allocation4 + $0x8] sm:$0xff] %vm86, %v112
  // Predicated region
  $region18: #{tpu_custom_call.1} parent=0 // pred_check
    %p115 = pneg %p14
  $region19: #{tpu_custom_call.1} parent=0 // pred_check_branch
    %117 = sbr.rel (%p115) target = $region21
  $region20: #{tpu_custom_call.1} parent=0 // pred_region
    %v118 = vld [vmem:[#allocation2] sm:$0xff]
    %v119 = vld [vmem:[#allocation2 + $0x8] sm:$0xff]
    %v120 = vld [vmem:[#allocation3] sm:$0xff]
    %v121 = vld [vmem:[#allocation3 + $0x8] sm:$0xff]
    %v122 = vlog2.pop %v120
    %v123 = vmul.f32 %v122, 0.6931472
    %v124 = vlog2.pop %v121
    %v125 = vmul.f32 %v124, 0.6931472
    %v126 = vadd.f32 %v118, %v123
    %v127 = vadd.f32 %v119, %v125
    %v128 = vld [vmem:[#allocation4] sm:$0xff]
    %v129 = vld [vmem:[#allocation4 + $0x8] sm:$0xff]
    %v130 = vsub.f32 %v126, %v128
    %v131 = vsub.f32 %v127, %v129
    %132 = vst.msk [vmem:[%s3] sm:$0xff] %vm86, %v130
    %133 = vst.msk [vmem:[%s3 + $0x8] sm:$0xff] %vm86, %v131
  $region21: #{tpu_custom_call.1} parent=0 // pred_fallthru
    _
  // Predicated region
  $region22: #{tpu_custom_call.1} parent=0 // pred_check
    _
  $region23: #{tpu_custom_call.1} parent=0 // pred_check_branch
    %135 = sbr.rel (0) target = $region25
  $region24: #{tpu_custom_call.1} parent=0 // pred_region
    _
  $region25: #{tpu_custom_call.1} parent=0 // pred_fallthru
    _
  // Predicated region
  $region26: #{tpu_custom_call.1} parent=0 // pred_check
    _
  $region27: #{tpu_custom_call.1} parent=0 // pred_check_branch
    %137 = sbr.rel (0) target = $region29
  $region28: #{tpu_custom_call.1} parent=0 // pred_region
    _
  $region29: #{tpu_custom_call.1} parent=0 // pred_fallthru
    _

</llo_original>
